<compile_context>
chip_gen: v7x
topology: tpu7x:2x2x1
jax: 0.10.0
libtpu: 0.0.40
codegen_flags: <defaults>
</compile_context>

<pallas_src>
import jax
import jax.numpy as jnp
from jax.experimental import pallas as pl
from jax.experimental.pallas import tpu as pltpu


def _round_up(x, m):
    return ((x + m - 1) // m) * m


def _embedding_kernel(x_ref, w1_ref, b1_ref, w2_ref, b2_ref, o_ref):
    """Fused Conv1d(k=1) -> ReLU -> Conv1d(k=1) on one row tile.

    Operands arrive in whatever dtype the caller stored in HBM (f32 or bf16); both matmuls
    accumulate in f32 on the MXU, bias-add and ReLU are f32 on the VPU, and only the
    in-VMEM intermediate is recast to the second matmul's operand dtype.
    """
    x = x_ref[...]
    w1 = w1_ref[...]
    w2 = w2_ref[...]

    h = jnp.dot(x, w1, preferred_element_type=jnp.float32) + b1_ref[...]
    h = jnp.maximum(h, 0.0)          # ReLU in f32
    h = h.astype(w2.dtype)           # no-op when w2 is f32; bf16 for the fast MXU path
    y = jnp.dot(h, w2, preferred_element_type=jnp.float32) + b2_ref[...]

    o_ref[...] = y.astype(o_ref.dtype)


def _choose_tile(n_rows, tile_rows):
    """Row tile: multiple of 8, ~tile_rows, and an EVEN number of grid steps (>=2 when the
    row count allows) so ("parallel",) shards the row grid across both v7x TensorCores."""
    tile_rows = max(8, _round_up(int(tile_rows), 8))
    pairs = -(-n_rows // (2 * tile_rows))          # ceil(N / (2*tile_rows))
    steps = max(2, 2 * pairs)                      # even, >= 2
    tile = _round_up(-(-n_rows // steps), 8)       # balanced, sublane-aligned
    return max(8, min(tile, _round_up(n_rows, 8)))


def embedding_forward(x, params, *, tile_rows=4096, out_dtype=None):
    """x: [B, T, D_in] -> [B, T, D_out]  (Conv1d(1) -> ReLU -> Conv1d(1), bias=True)."""
    B, T, D_in = x.shape
    D_out = params["w1"].shape[1]
    N = B * T
    out_dtype = x.dtype if out_dtype is None else out_dtype

    x2 = x.reshape(N, D_in)  # row-major view, no HBM transpose / copy

    tile = _choose_tile(N, tile_rows)
    grid = (pl.cdiv(N, tile),)  # uneven grid: last block's OOB reads padded, OOB stores dropped

    x_item = jnp.dtype(x2.dtype).itemsize
    o_item = jnp.dtype(out_dtype).itemsize
    w_bytes = sum(int(jnp.dtype(p.dtype).itemsize) * int(p.size) for p in params.values())

    # Honest cost estimate: actual DMA'd bytes (N rows, real dtypes) + weights.
    cost = pl.CostEstimate(
        flops=2 * N * (D_in * D_out + D_out * D_out),
        transcendentals=0,
        bytes_accessed=N * D_in * x_item + N * D_out * o_item + w_bytes,
    )

    # Explicit VMEM budget: lane-padded double-buffered x/out tiles + f32 intermediates
    # + resident weights + margin. Clamp to [32 MiB, 64 MiB] (v7x scoped default / physical).
    lane = 128
    vmem_est = (
        2 * tile * _round_up(D_in, lane) * x_item       # x tile, double-buffered
        + 2 * tile * _round_up(D_out, lane) * o_item    # out tile, double-buffered
        + 2 * tile * _round_up(D_out, lane) * 4         # f32 h / accumulator temporaries
        + 4 * w_bytes                                   # weights & biases (+ slack)
        + (4 << 20)                                     # compiler scratch margin
    )
    vmem_limit = min(64 << 20, max(32 << 20, int(vmem_est)))

    out = pl.pallas_call(
        _embedding_kernel,
        out_shape=jax.ShapeDtypeStruct((N, D_out), out_dtype),
        grid=grid,
        in_specs=[
            pl.BlockSpec((tile, D_in), lambda i: (i, 0)),     # x rows (pipelined)
            pl.BlockSpec((D_in, D_out), lambda i: (0, 0)),    # W1 (resident)
            pl.BlockSpec((1, D_out), lambda i: (0, 0)),       # b1 (resident, f32)
            pl.BlockSpec((D_out, D_out), lambda i: (0, 0)),   # W2 (resident)
            pl.BlockSpec((1, D_out), lambda i: (0, 0)),       # b2 (resident, f32)
        ],
        out_specs=pl.BlockSpec((tile, D_out), lambda i: (i, 0)),
        compiler_params=pltpu.CompilerParams(
            dimension_semantics=("parallel",),   # row grid shards across TCs (v7x megacore)
            vmem_limit_bytes=vmem_limit,
        ),
        cost_estimate=cost,
    )(x2, params["w1"], params["b1"], params["w2"], params["b2"])

    return out.reshape(B, T, D_out)


def init_params(key, in_channel, out_channel, dtype=jnp.float32):
    """Synthetic Conv1d(k=1) weights. PyTorch stores weight as [Co, Ci, 1]; we keep the
    transposed [Ci, Co] matrix so the kernel computes x @ W + b directly. W1/W2 are stored
    in `dtype` in HBM (bf16 halves weight DMA and hits the fast MXU path); biases stay f32
    since they are added after the f32 accumulation."""
    ks = jax.random.split(key, 4)
    s1 = 1.0 / jnp.sqrt(in_channel)
    s2 = 1.0 / jnp.sqrt(out_channel)
    w1 = (jax.random.normal(ks[0], (in_channel, out_channel), jnp.float32) * s1).astype(dtype)
    b1 = (jax.random.normal(ks[1], (1, out_channel), jnp.float32) * s1).astype(jnp.float32)
    w2 = (jax.random.normal(ks[2], (out_channel, out_channel), jnp.float32) * s2).astype(dtype)
    b2 = (jax.random.normal(ks[3], (1, out_channel), jnp.float32) * s2).astype(jnp.float32)
    return {"w1": w1, "b1": b1, "w2": w2, "b2": b2}


if __name__ == "__main__":
    # Small shapes consistent with the module: x = [B, T(num_his+num_pred), D_in].
    # T=100 makes N=200 NOT a multiple of the chosen tile, exercising the uneven-grid /
    # dropped-OOB-store path. out_channel=128 keeps output stores lane-dense (unmasked vst).
    B, T = 2, 100
    in_channel, out_channel = 32, 128

    key = jax.random.PRNGKey(0)
    kx, kp = jax.random.split(key)
    x = jax.random.normal(kx, (B, T, in_channel), dtype=jnp.float32)

    # f32 path (reference-checked).
    params = init_params(kp, in_channel, out_channel, dtype=jnp.float32)
    out = jax.block_until_ready(embedding_forward(x, params))
    assert out.shape == (B, T, out_channel)

    h_ref = jnp.maximum(
        jnp.einsum("btd,de->bte", x, params["w1"].astype(jnp.float32)) + params["b1"][0], 0.0
    )
    ref = jnp.einsum("bte,ef->btf", h_ref, params["w2"].astype(jnp.float32)) + params["b2"][0]
    assert jnp.allclose(out, ref, rtol=2e-2, atol=2e-2), float(jnp.max(jnp.abs(out - ref)))

    # bf16-operand path: bf16 x and weights stored in HBM (halves input/weight DMA),
    # f32 accumulation + f32 bias/ReLU inside the kernel, bf16 output.
    params_bf16 = {k: (v.astype(jnp.bfloat16) if k in ("w1", "w2") else v)
                   for k, v in params.items()}
    out_bf16 = jax.block_until_ready(
        embedding_forward(x.astype(jnp.bfloat16), params_bf16)
    )
    assert out_bf16.shape == (B, T, out_channel)
    assert jnp.allclose(out_bf16.astype(jnp.float32), ref, rtol=2e-1, atol=2e-1)

    print("KERNEL_OK")
</pallas_src>

<mosaic_0001>
module attributes {stable_mosaic.version = 11 : i64} {
  func.func @_embedding_kernel(%arg0: i32, %arg1: memref<104x32xf32, #tpu.memory_space<vmem>>, %arg2: memref<32x128xf32, #tpu.memory_space<vmem>>, %arg3: memref<1x128xf32, #tpu.memory_space<vmem>>, %arg4: memref<128x128xf32, #tpu.memory_space<vmem>>, %arg5: memref<1x128xf32, #tpu.memory_space<vmem>>, %arg6: memref<104x128xf32, #tpu.memory_space<vmem>>) attributes {dimension_semantics = [#tpu.dimension_semantics<parallel>], iteration_bounds = array<i64: 2>, scalar_prefetch = 0 : i64, scratch_operands = 0 : i64, tpu.core_type = #tpu.core_type<tc>, window_params = [{transform_indices = @transform_0, window_bounds = array<i64: 104, 32>}, {pipeline_mode = #tpu.pipeline_mode<synchronous>, transform_indices = @transform_1, window_bounds = array<i64: 32, 128>}, {pipeline_mode = #tpu.pipeline_mode<synchronous>, transform_indices = @transform_2, window_bounds = array<i64: 1, 128>}, {pipeline_mode = #tpu.pipeline_mode<synchronous>, transform_indices = @transform_3, window_bounds = array<i64: 128, 128>}, {pipeline_mode = #tpu.pipeline_mode<synchronous>, transform_indices = @transform_4, window_bounds = array<i64: 1, 128>}, {transform_indices = @transform_5, window_bounds = array<i64: 104, 128>}]} {
    %c0 = arith.constant 0 : index
    %c0_0 = arith.constant 0 : index
    %0 = vector.load %arg1[%c0, %c0_0] : memref<104x32xf32, #tpu.memory_space<vmem>>, vector<104x32xf32>
    %c0_1 = arith.constant 0 : index
    %c0_2 = arith.constant 0 : index
    %1 = vector.load %arg2[%c0_1, %c0_2] : memref<32x128xf32, #tpu.memory_space<vmem>>, vector<32x128xf32>
    %c0_3 = arith.constant 0 : index
    %c0_4 = arith.constant 0 : index
    %2 = vector.load %arg4[%c0_3, %c0_4] : memref<128x128xf32, #tpu.memory_space<vmem>>, vector<128x128xf32>
    %cst = arith.constant dense<0.000000e+00> : vector<104x128xf32>
    %3 = tpu.matmul %0, %1, %cst {dimension_numbers = #tpu.dot_dimension_numbers<[1], [0], [0], [1], [0, 0, 1, 1], [], []>} : vector<104x32xf32>, vector<32x128xf32>, vector<104x128xf32> -> vector<104x128xf32>
    %c0_5 = arith.constant 0 : index
    %c0_6 = arith.constant 0 : index
    %4 = vector.load %arg3[%c0_5, %c0_6] : memref<1x128xf32, #tpu.memory_space<vmem>>, vector<1x128xf32>
    %5 = vector.broadcast %4 : vector<1x128xf32> to vector<104x128xf32>
    %6 = arith.addf %3, %5 : vector<104x128xf32>
    %cst_7 = arith.constant 0.000000e+00 : f32
    %7 = vector.broadcast %cst_7 : f32 to vector<104x128xf32>
    %8 = arith.maximumf %6, %7 : vector<104x128xf32>
    %cst_8 = arith.constant dense<0.000000e+00> : vector<104x128xf32>
    %9 = tpu.matmul %8, %2, %cst_8 {dimension_numbers = #tpu.dot_dimension_numbers<[1], [0], [0], [1], [0, 0, 1, 1], [], []>} : vector<104x128xf32>, vector<128x128xf32>, vector<104x128xf32> -> vector<104x128xf32>
    %c0_9 = arith.constant 0 : index
    %c0_10 = arith.constant 0 : index
    %10 = vector.load %arg5[%c0_9, %c0_10] : memref<1x128xf32, #tpu.memory_space<vmem>>, vector<1x128xf32>
    %11 = vector.broadcast %10 : vector<1x128xf32> to vector<104x128xf32>
    %12 = arith.addf %9, %11 : vector<104x128xf32>
    %c0_11 = arith.constant 0 : index
    %c0_12 = arith.constant 0 : index
    %13 = vector.load %arg6[%c0_11, %c0_12] : memref<104x128xf32, #tpu.memory_space<vmem>>, vector<104x128xf32>
    tpu.vector_store %arg6[%c0_11, %c0_12], %12 {strides = array<i32>} : memref<104x128xf32, #tpu.memory_space<vmem>>, vector<104x128xf32>,
    return
  }
  func.func @transform_0(%arg0: i32) -> (i32, i32) {
    %c0_i32 = arith.constant 0 : i32
    %c0_i32_0 = arith.constant 0 : i32
    return %arg0, %c0_i32 : i32, i32
  }
  func.func @transform_1(%arg0: i32) -> (i32, i32) {
    %c0_i32 = arith.constant 0 : i32
    %c0_i32_0 = arith.constant 0 : i32
    %c0_i32_1 = arith.constant 0 : i32
    return %c0_i32, %c0_i32_0 : i32, i32
  }
  func.func @transform_2(%arg0: i32) -> (i32, i32) {
    %c0_i32 = arith.constant 0 : i32
    %c0_i32_0 = arith.constant 0 : i32
    %c0_i32_1 = arith.constant 0 : i32
    return %c0_i32, %c0_i32_0 : i32, i32
  }
  func.func @transform_3(%arg0: i32) -> (i32, i32) {
    %c0_i32 = arith.constant 0 : i32
    %c0_i32_0 = arith.constant 0 : i32
    %c0_i32_1 = arith.constant 0 : i32
    return %c0_i32, %c0_i32_0 : i32, i32
  }
  func.func @transform_4(%arg0: i32) -> (i32, i32) {
    %c0_i32 = arith.constant 0 : i32
    %c0_i32_0 = arith.constant 0 : i32
    %c0_i32_1 = arith.constant 0 : i32
    return %c0_i32, %c0_i32_0 : i32, i32
  }
  func.func @transform_5(%arg0: i32) -> (i32, i32) {
    %c0_i32 = arith.constant 0 : i32
    %c0_i32_0 = arith.constant 0 : i32
    return %arg0, %c0_i32 : i32, i32
  }
}

</mosaic_0001>

<llo_original>
// kernel: tpu_custom_call.1
$region0: #{tpu_custom_call.1}
  #allocation0 [shape = 'u32[]', space=smem, size = 0x4, offset = 0x4, fixed_abs, tag = 'smem constant byte address 0x4 - core index']
  #allocation1 [shape = 'u32[144,128]{1,0:T(1,128)}', space=vmem, size = 0x12000, scoped, tag = 'internal scratch']
  %s0 = inlined_call_operand.vmem [shape: f32[200,32], index: 0, kind: input, shape index: {}]
  %s1 = inlined_call_operand.vmem [shape: f32[32,128], index: 1, kind: input, shape index: {}]
  %s2 = inlined_call_operand.vmem [shape: f32[1,128], index: 2, kind: input, shape index: {}]
  %s3 = inlined_call_operand.vmem [shape: f32[128,128], index: 3, kind: input, shape index: {}]
  %s4 = inlined_call_operand.vmem [shape: f32[1,128], index: 4, kind: input, shape index: {}]
  %s5 = inlined_call_operand.hbm [shape: f32[200,128], index: 5, kind: output, shape index: {}]
  %s6 = sld [smem:[#allocation0]]
  $region53: #{tpu_custom_call.1} parent=0
    _
  %s8 = ssub.s32 1, %s6
  %s9 = scalar_select 0, %s8, %s6
  $region1: #{tpu_custom_call.1} parent=0
    #allocation2 [shape = 'u8[106496]{0}', space=vmem, size = 0x1a000, scoped, tag = 'output window, operand 0']
    #allocation3 [shape = 's32[2]{0}', space=sflag, size = 0x8, scoped, tag = 'scoped memory for tpu_custom_call.1']
    %10 = vsyncpa [#allocation3], 0
    %s11 = scalar_lea.sflag [#allocation3], 1
    %12 = vsyncpa %s11, 0
    loop: start=0, step=1, limit=4
    $region2: #{tpu_custom_call.1} parent=1 // loop_pre_header
      _
    $region3: #{tpu_custom_call.1} parent=1 // loop_header
      %s14 = sphi 0, %s18
      %p15 = scmp.ge.s32.totalorder %s14, 4
      %s24 = sphi 0, %s26
      %s27 = sphi 0, %s24
      %s28 = sphi 0, %s27
      %s44 = sphi 0, %s28
      %s48 = sphi 0, %s48
      %s50 = sphi 0, %s48
      %s51 = sphi 0, %s50
      %s65 = sphi 0, %s51
      %s69 = sphi 0, %s69
      %s71 = sphi 0, %s69
      %s72 = sphi 0, %s71
      %s86 = sphi 0, %s72
      %s90 = sphi 0, %s90
      %s92 = sphi 0, %s90
      %s93 = sphi 0, %s92
      %s107 = sphi 0, %s93
      %s111 = sphi 0, %s111
      %s113 = sphi 0, %s111
      %s114 = sphi 0, %s113
      %s128 = sphi 0, %s114
      %s134 = sphi 0, %s136
      %s137 = sphi 0, %s134
      %s138 = sphi 0, %s137
      %s154 = sphi 0, %s138
    $region4: #{tpu_custom_call.1} parent=1 // loop_header_branch
      %17 = sbr.rel (%p15) target = $region8
    $region5: #{tpu_custom_call.1} parent=1 // loop_body
      %s19 = ssub.s32 %s14, 1
      %s20 = ssub.s32 %s14, 2
      %s21 = sadd.s32 %s14, 1
      %s22 = ssub.s32 %s14, %s21
      %p23 = scmp.eq.s32.totalorder %s22, 0
      %s25 = sadd.s32 %s24, 1
      %s26 = scalar_select %p23, %s24, %s25
      %p29 = pneg %p23
      %p30 = scmp.eq.s32.totalorder %s14, 1
      %p31 = por %p29, %p30
      %p32 = scmp.ne.s32.totalorder %s24, %s27
      %p33 = scmp.eq.s32.totalorder %s14, 0
      %p34 = por %p32, %p33
      %p35 = scmp.ne.s32.totalorder %s24, %s27
      %p36 = scmp.eq.s32.totalorder %s19, 1
      %p37 = por %p35, %p36
      %p38 = scmp.ne.s32.totalorder %s27, %s28
      %p39 = scmp.eq.s32.totalorder %s19, 0
      %p40 = por %p38, %p39
      %p41 = scmp.ne.s32.totalorder %s27, %s28
      %p42 = scmp.eq.s32.totalorder %s20, 1
      %p43 = por %p41, %p42
      %p45 = scmp.ne.s32.totalorder %s28, %s44
      %p46 = scmp.eq.s32.totalorder %s20, 0
      %p47 = por %p45, %p46
      %s49 = sadd.s32 %s48, 1
      %p52 = scmp.eq.s32.totalorder %s14, 1
      %p53 = scmp.ne.s32.totalorder %s48, %s50
      %p54 = scmp.eq.s32.totalorder %s14, 0
      %p55 = por %p53, %p54
      %p56 = scmp.ne.s32.totalorder %s48, %s50
      %p57 = scmp.eq.s32.totalorder %s19, 1
      %p58 = por %p56, %p57
      %p59 = scmp.ne.s32.totalorder %s50, %s51
      %p60 = scmp.eq.s32.totalorder %s19, 0
      %p61 = por %p59, %p60
      %p62 = scmp.ne.s32.totalorder %s50, %s51
      %p63 = scmp.eq.s32.totalorder %s20, 1
      %p64 = por %p62, %p63
      %p66 = scmp.ne.s32.totalorder %s51, %s65
      %p67 = scmp.eq.s32.totalorder %s20, 0
      %p68 = por %p66, %p67
      %s70 = sadd.s32 %s69, 1
      %p73 = scmp.eq.s32.totalorder %s14, 1
      %p74 = scmp.ne.s32.totalorder %s69, %s71
      %p75 = scmp.eq.s32.totalorder %s14, 0
      %p76 = por %p74, %p75
      %p77 = scmp.ne.s32.totalorder %s69, %s71
      %p78 = scmp.eq.s32.totalorder %s19, 1
      %p79 = por %p77, %p78
      %p80 = scmp.ne.s32.totalorder %s71, %s72
      %p81 = scmp.eq.s32.totalorder %s19, 0
      %p82 = por %p80, %p81
      %p83 = scmp.ne.s32.totalorder %s71, %s72
      %p84 = scmp.eq.s32.totalorder %s20, 1
      %p85 = por %p83, %p84
      %p87 = scmp.ne.s32.totalorder %s72, %s86
      %p88 = scmp.eq.s32.totalorder %s20, 0
      %p89 = por %p87, %p88
      %s91 = sadd.s32 %s90, 1
      %p94 = scmp.eq.s32.totalorder %s14, 1
      %p95 = scmp.ne.s32.totalorder %s90, %s92
      %p96 = scmp.eq.s32.totalorder %s14, 0
      %p97 = por %p95, %p96
      %p98 = scmp.ne.s32.totalorder %s90, %s92
      %p99 = scmp.eq.s32.totalorder %s19, 1
      %p100 = por %p98, %p99
      %p101 = scmp.ne.s32.totalorder %s92, %s93
      %p102 = scmp.eq.s32.totalorder %s19, 0
      %p103 = por %p101, %p102
      %p104 = scmp.ne.s32.totalorder %s92, %s93
      %p105 = scmp.eq.s32.totalorder %s20, 1
      %p106 = por %p104, %p105
      %p108 = scmp.ne.s32.totalorder %s93, %s107
      %p109 = scmp.eq.s32.totalorder %s20, 0
      %p110 = por %p108, %p109
      %s112 = sadd.s32 %s111, 1
      %p115 = scmp.eq.s32.totalorder %s14, 1
      %p116 = scmp.ne.s32.totalorder %s111, %s113
      %p117 = scmp.eq.s32.totalorder %s14, 0
      %p118 = por %p116, %p117
      %p119 = scmp.ne.s32.totalorder %s111, %s113
      %p120 = scmp.eq.s32.totalorder %s19, 1
      %p121 = por %p119, %p120
      %p122 = scmp.ne.s32.totalorder %s113, %s114
      %p123 = scmp.eq.s32.totalorder %s19, 0
      %p124 = por %p122, %p123
      %p125 = scmp.ne.s32.totalorder %s113, %s114
      %p126 = scmp.eq.s32.totalorder %s20, 1
      %p127 = por %p125, %p126
      %p129 = scmp.ne.s32.totalorder %s114, %s128
      %p130 = scmp.eq.s32.totalorder %s20, 0
      %p131 = por %p129, %p130
      %s132 = ssub.s32 %s14, %s21
      %p133 = scmp.eq.s32.totalorder %s132, 0
      %s135 = sadd.s32 %s134, 1
      %s136 = scalar_select %p133, %s134, %s135
      %p139 = pneg %p133
      %p140 = scmp.eq.s32.totalorder %s14, 1
      %p141 = por %p139, %p140
      %p142 = scmp.ne.s32.totalorder %s134, %s137
      %p143 = scmp.eq.s32.totalorder %s14, 0
      %p144 = por %p142, %p143
      %p145 = scmp.ne.s32.totalorder %s134, %s137
      %p146 = scmp.eq.s32.totalorder %s19, 1
      %p147 = por %p145, %p146
      %p148 = scmp.ne.s32.totalorder %s137, %s138
      %p149 = scmp.eq.s32.totalorder %s19, 0
      %p150 = por %p148, %p149
      %p151 = scmp.ne.s32.totalorder %s137, %s138
      %p152 = scmp.eq.s32.totalorder %s20, 1
      %p153 = por %p151, %p152
      %p155 = scmp.ne.s32.totalorder %s138, %s154
      %p156 = scmp.eq.s32.totalorder %s20, 0
      %p157 = por %p155, %p156
      %p158 = scmp.le.s32.totalorder 1, %s14
      %p159 = scmp.lt.s32.totalorder %s14, 3
      %p160 = pnand %p158, %p159
      %p161 = pneg %p160
      // Predicated region
      $region9: #{tpu_custom_call.1} parent=5 // pred_check
        _
      $region10: #{tpu_custom_call.1} parent=5 // pred_check_branch
        %163 = sbr.rel (%p160) target = $region12
      $region11: #{tpu_custom_call.1} parent=5 // pred_region
        %s164 = ssub.s32 %s14, 1
        // Predicated region
        $region13: #{tpu_custom_call.1} parent=11 // pred_check
          %p165 = pneg %p61
        $region14: #{tpu_custom_call.1} parent=11 // pred_check_branch
          %167 = sbr.rel (%p165) target = $region16
        $region15: #{tpu_custom_call.1} parent=11 // pred_region
          _
        $region16: #{tpu_custom_call.1} parent=11 // pred_fallthru
          _
        // Predicated region
        $region17: #{tpu_custom_call.1} parent=11 // pred_check
          %p168 = pneg %p82
        $region18: #{tpu_custom_call.1} parent=11 // pred_check_branch
          %170 = sbr.rel (%p168) target = $region20
        $region19: #{tpu_custom_call.1} parent=11 // pred_region
          _
        $region20: #{tpu_custom_call.1} parent=11 // pred_fallthru
          _
        // Predicated region
        $region21: #{tpu_custom_call.1} parent=11 // pred_check
          %p171 = pneg %p103
        $region22: #{tpu_custom_call.1} parent=11 // pred_check_branch
          %173 = sbr.rel (%p171) target = $region24
        $region23: #{tpu_custom_call.1} parent=11 // pred_region
          _
        $region24: #{tpu_custom_call.1} parent=11 // pred_fallthru
          _
        // Predicated region
        $region25: #{tpu_custom_call.1} parent=11 // pred_check
          %p174 = pneg %p124
        $region26: #{tpu_custom_call.1} parent=11 // pred_check_branch
          %176 = sbr.rel (%p174) target = $region28
        $region27: #{tpu_custom_call.1} parent=11 // pred_region
          _
        $region28: #{tpu_custom_call.1} parent=11 // pred_fallthru
          _
      $region12: #{tpu_custom_call.1} parent=5 // pred_fallthru
        _
      %p177 = scmp.lt.s32.totalorder %s14, 2
      // Predicated region
      $region29: #{tpu_custom_call.1} parent=5 // pred_check
        %p178 = pneg %p177
      $region30: #{tpu_custom_call.1} parent=5 // pred_check_branch
        %180 = sbr.rel (%p178) target = $region32
      $region31: #{tpu_custom_call.1} parent=5 // pred_region
        // Predicated region
        $region33: #{tpu_custom_call.1} parent=31 // pred_check
          %p181 = pneg %p34
        $region34: #{tpu_custom_call.1} parent=31 // pred_check_branch
          %183 = sbr.rel (%p181) target = $region36
        $region35: #{tpu_custom_call.1} parent=31 // pred_region
          %s184 = smul.u32 13, %s14
          %s185 = ssub.s32 25, %s184
          %p186 = scmp.lt.s32.totalorder %s185, 13
          %s187 = scalar_select %p186, %s185, 13
          %s188 = smul.u32 128, %s187
          %p189 = scmp.lt.s32.totalorder %s184, 24
          %s190 = scalar_select %p189, %s184, 24
          %s191 = smul.addr %s190, 8
          %s192 = scalar_lea.vmem %s0, %s191
          %s193 = smul.u32 13, %s14
          %s194 = ssub.s32 25, %s193
          %p195 = scmp.lt.s32.totalorder %s194, 13
          %s196 = scalar_select %p195, %s194, 13
          %s197 = smul.u32 128, %s196
        $region36: #{tpu_custom_call.1} parent=31 // pred_fallthru
          _
      $region32: #{tpu_custom_call.1} parent=5 // pred_fallthru
        _
      %p198 = scmp.le.s32.totalorder 1, %s14
      %p199 = scmp.lt.s32.totalorder %s14, 3
      %p200 = pnand %p198, %p199
      %p201 = pneg %p200
      // Predicated region
      $region37: #{tpu_custom_call.1} parent=5 // pred_check
        _
      $region38: #{tpu_custom_call.1} parent=5 // pred_check_branch
        %203 = sbr.rel (%p200) target = $region40
      $region39: #{tpu_custom_call.1} parent=5 // pred_region
        %s204 = ssub.s32 %s14, 1
        %s205 = smul.u32 13, %s19
        %s206 = ssub.s32 25, %s205
        %p207 = scmp.lt.s32.totalorder %s206, 13
        %s208 = scalar_select %p207, %s206, 13
        %s209 = smul.u32 128, %s208
        %p210 = scmp.lt.s32.totalorder %s205, 24
        %s211 = scalar_select %p210, %s205, 24
        %s212 = smul.addr %s211, 8
        %s213 = scalar_lea.vmem %s0, %s212
        %p214 = pneg %p40
        %p215 = pneg %p37
        %p216 = pneg %p61
        %p217 = pneg %p58
        %p218 = pneg %p82
        %p219 = pneg %p79
        %p220 = pneg %p103
        %p221 = pneg %p100
        %p222 = pneg %p124
        %p223 = pneg %p121
        %p224 = pneg %p150
        %p225 = pneg %p147
        %s226 = sand.u32 %s137, 1
        %s227 = scalar_lea.sflag [#allocation3], %s226
        %s228 = sand.u32 %s137, 1
        %s229 = smul.addr %s228, 104
        %s230 = scalar_lea.vmem [#allocation2], %s229
        %s231 = smul.u32 13, %s19
        %s232 = ssub.s32 25, %s231
        %p233 = scmp.lt.s32.totalorder %s232, 13
        %s234 = scalar_select %p233, %s232, 13
        %s235 = smul.u32 128, %s234
        %p236 = scmp.lt.s32.totalorder %s231, 24
        %s237 = scalar_select %p236, %s231, 24
        %s238 = smul.addr %s237, 8
        %s239 = scalar_lea.vmem %s0, %s238
        %s240 = smul.u32 13, %s19
        %s241 = ssub.s32 25, %s240
        %p242 = scmp.lt.s32.totalorder %s241, 13
        %s243 = scalar_select %p242, %s241, 13
        %s244 = smul.u32 128, %s243
        %s245 = smul.u32 13, %s19
        %s246 = ssub.s32 25, %s245
        %p247 = scmp.lt.s32.totalorder %s246, 13
        %s248 = scalar_select %p247, %s246, 13
        %s249 = smul.u32 128, %s248
        %v250 = vld [vmem:[%s239] sm:$0xff]
        %v251 = vld [vmem:[%s239 + $0x8] sm:$0xff]
        %v252 = vld [vmem:[%s239 + $0x10] sm:$0xff]
        %v253 = vld [vmem:[%s239 + $0x18] sm:$0xff]
        %v254 = vld [vmem:[%s239 + $0x20] sm:$0xff]
        %v255 = vld [vmem:[%s239 + $0x28] sm:$0xff]
        %v256 = vld [vmem:[%s239 + $0x30] sm:$0xff]
        %v257 = vld [vmem:[%s239 + $0x38] sm:$0xff]
        %v258 = vld [vmem:[%s239 + $0x40] sm:$0xff]
        %v259 = vld [vmem:[%s239 + $0x48] sm:$0xff]
        %v260 = vld [vmem:[%s239 + $0x50] sm:$0xff]
        %v261 = vld [vmem:[%s239 + $0x58] sm:$0xff]
        %v262 = vld [vmem:[%s239 + $0x60] sm:$0xff]
        %v263 = vld [vmem:[%s1] sm:$0xff]
        %v264 = vld [vmem:[%s1 + $0x8] sm:$0xff]
        %v265 = vld [vmem:[%s1 + $0x10] sm:$0xff]
        %v266 = vld [vmem:[%s1 + $0x18] sm:$0xff]
        %v267 = vld [vmem:[%s3] sm:$0xff]
        %v268 = vld [vmem:[%s3 + $0x8] sm:$0xff]
        %v269 = vld [vmem:[%s3 + $0x10] sm:$0xff]
        %v270 = vld [vmem:[%s3 + $0x18] sm:$0xff]
        %v271 = vld [vmem:[%s3 + $0x20] sm:$0xff]
        %v272 = vld [vmem:[%s3 + $0x28] sm:$0xff]
        %v273 = vld [vmem:[%s3 + $0x30] sm:$0xff]
        %v274 = vld [vmem:[%s3 + $0x38] sm:$0xff]
        %v275 = vld [vmem:[%s3 + $0x40] sm:$0xff]
        %v276 = vld [vmem:[%s3 + $0x48] sm:$0xff]
        %v277 = vld [vmem:[%s3 + $0x50] sm:$0xff]
        %v278 = vld [vmem:[%s3 + $0x58] sm:$0xff]
        %v279 = vld [vmem:[%s3 + $0x60] sm:$0xff]
        %v280 = vld [vmem:[%s3 + $0x68] sm:$0xff]
        %v281 = vld [vmem:[%s3 + $0x70] sm:$0xff]
        %v282 = vld [vmem:[%s3 + $0x78] sm:$0xff]
        %v283 = vld [vmem:[%s2] sm:$0x1]
        %v285 = vlaneseq
        %v286 = vshrl.u32 %v285, 7
        %v287 = vsub.s32 0, %v286
        %v288 = vrot.slane %v283, %v287
        %vm290 = vcmask 261120
        %v292 = vsel %vm290, %v250, 0
        %v295 = vsel %vm290, %v251, 0
        %v298 = vsel %vm290, %v252, 0
        %v301 = vsel %vm290, %v253, 0
        %v304 = vsel %vm290, %v254, 0
        %v307 = vsel %vm290, %v255, 0
        %v310 = vsel %vm290, %v256, 0
        %v313 = vsel %vm290, %v257, 0
        %v316 = vsel %vm290, %v258, 0
        %v319 = vsel %vm290, %v259, 0
        %v322 = vsel %vm290, %v260, 0
        %v325 = vsel %vm290, %v261, 0
        %v328 = vsel %vm290, %v262, 0
        %330 = vmatprep.subr.mxu0 0.0
        %331 = vmatpush1.msra.mxu0 %v263
        %332 = vmatprep.subr.mxu0 0.0
        %333 = vmatpush1.msra.mxu0 %v264
        %334 = vmatprep.subr.mxu0 0.0
        %335 = vmatpush1.msra.mxu0 %v265
        %336 = vmatprep.subr.mxu0 0.0
        %337 = vmatpush1.msra.mxu0 %v266
        %338 = vmatprep.subr.mxu0 0.0
        %339 = vmatpush1.msra.mxu0 0.0
        %340 = vmatprep.subr.mxu0 0.0
        %341 = vmatpush1.msra.mxu0 0.0
        %342 = vmatprep.subr.mxu0 0.0
        %343 = vmatpush1.msra.mxu0 0.0
        %344 = vmatprep.subr.mxu0 0.0
        %345 = vmatpush1.msra.mxu0 0.0
        %346 = vmatprep.subr.mxu0 0.0
        %347 = vmatpush1.msra.mxu0 0.0
        %348 = vmatprep.subr.mxu0 0.0
        %349 = vmatpush1.msra.mxu0 0.0
        %350 = vmatprep.subr.mxu0 0.0
        %351 = vmatpush1.msra.mxu0 0.0
        %352 = vmatprep.subr.mxu0 0.0
        %353 = vmatpush1.msra.mxu0 0.0
        %354 = vmatprep.subr.mxu0 0.0
        %355 = vmatpush1.msra.mxu0 0.0
        %356 = vmatprep.subr.mxu0 0.0
        %357 = vmatpush1.msra.mxu0 0.0
        %358 = vmatprep.subr.mxu0 0.0
        %359 = vmatpush1.msra.mxu0 0.0
        %360 = vmatprep.subr.mxu0 0.0
        %361 = vmatpush1.msra.mxu0 0.0
        %362 = vmatprep.subr.mxu0 0.0
        %363 = vmatpush1.msra.mxu0 0.0
        %364 = vmatprep.subr.mxu0 0.0
        %365 = vmatpush1.msra.mxu0 0.0
        %366 = vmatprep.subr.mxu0 0.0
        %367 = vmatpush1.msra.mxu0 0.0
        %368 = vmatprep.subr.mxu0 0.0
        %369 = vmatpush1.msra.mxu0 0.0
        %370 = vmatprep.subr.mxu0 0.0
        %371 = vmatpush1.msra.mxu0 0.0
        %372 = vmatprep.subr.mxu0 0.0
        %373 = vmatpush1.msra.mxu0 0.0
        %374 = vmatprep.subr.mxu0 0.0
        %375 = vmatpush1.msra.mxu0 0.0
        %376 = vmatprep.subr.mxu0 0.0
        %377 = vmatpush1.msra.mxu0 0.0
        %378 = vmatprep.subr.mxu0 0.0
        %379 = vmatpush1.msra.mxu0 0.0
        %380 = vmatprep.subr.mxu0 0.0
        %381 = vmatpush1.msra.mxu0 0.0
        %382 = vmatprep.subr.mxu0 0.0
        %383 = vmatpush1.msra.mxu0 0.0
        %384 = vmatprep.subr.mxu0 0.0
        %385 = vmatpush1.msra.mxu0 0.0
        %386 = vmatprep.subr.mxu0 0.0
        %387 = vmatpush1.msra.mxu0 0.0
        %388 = vmatprep.subr.mxu0 0.0
        %389 = vmatpush1.msra.mxu0 0.0
        %390 = vmatprep.subr.mxu0 0.0
        %391 = vmatpush1.msra.mxu0 0.0
        %392 = vmatprep.subr.mxu0 0.0
        %393 = vmatpush1.msra.mxu0 0.0
        %394 = vmatprep.mubr.f32.mxu0 0.0
        %395 = vmatmul.mubr.f32.gmra.mrb[0].mxu0 %v292
        %v396 = vpop.f32.mrb[0].mxu0
        %v397 = vadd.f32 %v288, %v396
        %v398 = vpop.f32.mrb[0].mxu0
        %399 = vmatprep.mubr.f32.mxu0 0.0
        %400 = vmatmul.mubr.f32.gmra.mrb[0].mxu0 %v295
        %v401 = vpop.f32.mrb[0].mxu0
        %v402 = vadd.f32 %v288, %v401
        %v403 = vpop.f32.mrb[0].mxu0
        %404 = vmatprep.mubr.f32.mxu0 0.0
        %405 = vmatmul.mubr.f32.gmra.mrb[0].mxu0 %v298
        %v406 = vpop.f32.mrb[0].mxu0
        %v407 = vadd.f32 %v288, %v406
        %v408 = vpop.f32.mrb[0].mxu0
        %409 = vmatprep.mubr.f32.mxu0 0.0
        %410 = vmatmul.mubr.f32.gmra.mrb[0].mxu0 %v301
        %v411 = vpop.f32.mrb[0].mxu0
        %v412 = vadd.f32 %v288, %v411
        %v413 = vpop.f32.mrb[0].mxu0
        %414 = vmatprep.mubr.f32.mxu0 0.0
        %415 = vmatmul.mubr.f32.gmra.mrb[0].mxu0 %v304
        %v416 = vpop.f32.mrb[0].mxu0
        %v417 = vadd.f32 %v288, %v416
        %v418 = vpop.f32.mrb[0].mxu0
        %419 = vmatprep.mubr.f32.mxu0 0.0
        %420 = vmatmul.mubr.f32.gmra.mrb[0].mxu0 %v307
        %v421 = vpop.f32.mrb[0].mxu0
        %v422 = vadd.f32 %v288, %v421
        %v423 = vpop.f32.mrb[0].mxu0
        %424 = vmatprep.mubr.f32.mxu0 0.0
        %425 = vmatmul.mubr.f32.gmra.mrb[0].mxu0 %v310
        %v426 = vpop.f32.mrb[0].mxu0
        %v427 = vadd.f32 %v288, %v426
        %v428 = vpop.f32.mrb[0].mxu0
        %429 = vmatprep.mubr.f32.mxu0 0.0
        %430 = vmatmul.mubr.f32.gmra.mrb[0].mxu0 %v313
        %v431 = vpop.f32.mrb[0].mxu0
        %v432 = vadd.f32 %v288, %v431
        %v433 = vpop.f32.mrb[0].mxu0
        %434 = vmatprep.mubr.f32.mxu0 0.0
        %435 = vmatmul.mubr.f32.gmra.mrb[0].mxu0 %v316
        %v436 = vpop.f32.mrb[0].mxu0
        %v437 = vadd.f32 %v288, %v436
        %v438 = vpop.f32.mrb[0].mxu0
        %439 = vmatprep.mubr.f32.mxu0 0.0
        %440 = vmatmul.mubr.f32.gmra.mrb[0].mxu0 %v319
        %v441 = vpop.f32.mrb[0].mxu0
        %v442 = vadd.f32 %v288, %v441
        %v443 = vpop.f32.mrb[0].mxu0
        %444 = vmatprep.mubr.f32.mxu0 0.0
        %445 = vmatmul.mubr.f32.gmra.mrb[0].mxu0 %v322
        %v446 = vpop.f32.mrb[0].mxu0
        %v447 = vadd.f32 %v288, %v446
        %v448 = vpop.f32.mrb[0].mxu0
        %449 = vmatprep.mubr.f32.mxu0 0.0
        %450 = vmatmul.mubr.f32.gmra.mrb[0].mxu0 %v325
        %v451 = vpop.f32.mrb[0].mxu0
        %v452 = vadd.f32 %v288, %v451
        %v453 = vpop.f32.mrb[0].mxu0
        %454 = vmatprep.mubr.f32.mxu0 0.0
        %455 = vmatmul.mubr.f32.gmra.mrb[0].mxu0 %v328
        %v456 = vpop.f32.mrb[0].mxu0
        %v457 = vadd.f32 %v288, %v456
        %v458 = vpop.f32.mrb[0].mxu0
        %459 = vdwg.mxu0
        %v460 = vmax.f32 %v397, 0.0
        %v461 = vmax.f32 %v402, 0.0
        %v462 = vmax.f32 %v407, 0.0
        %v463 = vmax.f32 %v412, 0.0
        %v464 = vmax.f32 %v417, 0.0
        %v465 = vmax.f32 %v422, 0.0
        %v466 = vmax.f32 %v427, 0.0
        %v467 = vmax.f32 %v432, 0.0
        %v468 = vmax.f32 %v437, 0.0
        %v469 = vmax.f32 %v442, 0.0
        %v470 = vmax.f32 %v447, 0.0
        %v471 = vmax.f32 %v452, 0.0
        %v472 = vmax.f32 %v457, 0.0
        %v473 = vld [vmem:[%s4] sm:$0x1]
        %v475 = vlaneseq
        %v476 = vshrl.u32 %v475, 7
        %v477 = vsub.s32 0, %v476
        %v478 = vrot.slane %v473, %v477
        %480 = vmatprep.subr.mxu0 0.0
        %481 = vmatpush1.msra.mxu0 %v267
        %482 = vmatprep.subr.mxu0 0.0
        %483 = vmatpush1.msra.mxu0 %v268
        %484 = vmatprep.subr.mxu0 0.0
        %485 = vmatpush1.msra.mxu0 %v269
        %486 = vmatprep.subr.mxu0 0.0
        %487 = vmatpush1.msra.mxu0 %v270
        %488 = vmatprep.subr.mxu0 0.0
        %489 = vmatpush1.msra.mxu0 %v271
        %490 = vmatprep.subr.mxu0 0.0
        %491 = vmatpush1.msra.mxu0 %v272
        %492 = vmatprep.subr.mxu0 0.0
        %493 = vmatpush1.msra.mxu0 %v273
        %494 = vmatprep.subr.mxu0 0.0
        %495 = vmatpush1.msra.mxu0 %v274
        %496 = vmatprep.subr.mxu0 0.0
        %497 = vmatpush1.msra.mxu0 %v275
        %498 = vmatprep.subr.mxu0 0.0
        %499 = vmatpush1.msra.mxu0 %v276
        %500 = vmatprep.subr.mxu0 0.0
        %501 = vmatpush1.msra.mxu0 %v277
        %502 = vmatprep.subr.mxu0 0.0
        %503 = vmatpush1.msra.mxu0 %v278
        %504 = vmatprep.subr.mxu0 0.0
        %505 = vmatpush1.msra.mxu0 %v279
        %506 = vmatprep.subr.mxu0 0.0
        %507 = vmatpush1.msra.mxu0 %v280
        %508 = vmatprep.subr.mxu0 0.0
        %509 = vmatpush1.msra.mxu0 %v281
        %510 = vmatprep.subr.mxu0 0.0
        %511 = vmatpush1.msra.mxu0 %v282
        %512 = vmatprep.subr.mxu0 0.0
        %513 = vmatpush1.msra.mxu0 0.0
        %514 = vmatprep.subr.mxu0 0.0
        %515 = vmatpush1.msra.mxu0 0.0
        %516 = vmatprep.subr.mxu0 0.0
        %517 = vmatpush1.msra.mxu0 0.0
        %518 = vmatprep.subr.mxu0 0.0
        %519 = vmatpush1.msra.mxu0 0.0
        %520 = vmatprep.subr.mxu0 0.0
        %521 = vmatpush1.msra.mxu0 0.0
        %522 = vmatprep.subr.mxu0 0.0
        %523 = vmatpush1.msra.mxu0 0.0
        %524 = vmatprep.subr.mxu0 0.0
        %525 = vmatpush1.msra.mxu0 0.0
        %526 = vmatprep.subr.mxu0 0.0
        %527 = vmatpush1.msra.mxu0 0.0
        %528 = vmatprep.subr.mxu0 0.0
        %529 = vmatpush1.msra.mxu0 0.0
        %530 = vmatprep.subr.mxu0 0.0
        %531 = vmatpush1.msra.mxu0 0.0
        %532 = vmatprep.subr.mxu0 0.0
        %533 = vmatpush1.msra.mxu0 0.0
        %534 = vmatprep.subr.mxu0 0.0
        %535 = vmatpush1.msra.mxu0 0.0
        %536 = vmatprep.subr.mxu0 0.0
        %537 = vmatpush1.msra.mxu0 0.0
        %538 = vmatprep.subr.mxu0 0.0
        %539 = vmatpush1.msra.mxu0 0.0
        %540 = vmatprep.subr.mxu0 0.0
        %541 = vmatpush1.msra.mxu0 0.0
        %542 = vmatprep.subr.mxu0 0.0
        %543 = vmatpush1.msra.mxu0 0.0
        %544 = vmatprep.mubr.f32.mxu0 0.0
        %545 = vmatmul.mubr.f32.gmra.mrb[0].mxu0 %v460
        %v546 = vpop.f32.mrb[0].mxu0
        %v547 = vadd.f32 %v478, %v546
        %v548 = vpop.f32.mrb[0].mxu0
        %549 = vmatprep.mubr.f32.mxu0 0.0
        %550 = vmatmul.mubr.f32.gmra.mrb[0].mxu0 %v461
        %v551 = vpop.f32.mrb[0].mxu0
        %v552 = vadd.f32 %v478, %v551
        %v553 = vpop.f32.mrb[0].mxu0
        %554 = vmatprep.mubr.f32.mxu0 0.0
        %555 = vmatmul.mubr.f32.gmra.mrb[0].mxu0 %v462
        %v556 = vpop.f32.mrb[0].mxu0
        %v557 = vadd.f32 %v478, %v556
        %v558 = vpop.f32.mrb[0].mxu0
        %559 = vmatprep.mubr.f32.mxu0 0.0
        %560 = vmatmul.mubr.f32.gmra.mrb[0].mxu0 %v463
        %v561 = vpop.f32.mrb[0].mxu0
        %v562 = vadd.f32 %v478, %v561
        %v563 = vpop.f32.mrb[0].mxu0
        %564 = vmatprep.mubr.f32.mxu0 0.0
        %565 = vmatmul.mubr.f32.gmra.mrb[0].mxu0 %v464
        %v566 = vpop.f32.mrb[0].mxu0
        %v567 = vadd.f32 %v478, %v566
        %v568 = vpop.f32.mrb[0].mxu0
        %569 = vmatprep.mubr.f32.mxu0 0.0
        %570 = vmatmul.mubr.f32.gmra.mrb[0].mxu0 %v465
        %v571 = vpop.f32.mrb[0].mxu0
        %v572 = vadd.f32 %v478, %v571
        %v573 = vpop.f32.mrb[0].mxu0
        %574 = vmatprep.mubr.f32.mxu0 0.0
        %575 = vmatmul.mubr.f32.gmra.mrb[0].mxu0 %v466
        %v576 = vpop.f32.mrb[0].mxu0
        %v577 = vadd.f32 %v478, %v576
        %v578 = vpop.f32.mrb[0].mxu0
        %579 = vmatprep.mubr.f32.mxu0 0.0
        %580 = vmatmul.mubr.f32.gmra.mrb[0].mxu0 %v467
        %v581 = vpop.f32.mrb[0].mxu0
        %v582 = vadd.f32 %v478, %v581
        %v583 = vpop.f32.mrb[0].mxu0
        %584 = vmatprep.mubr.f32.mxu0 0.0
        %585 = vmatmul.mubr.f32.gmra.mrb[0].mxu0 %v468
        %v586 = vpop.f32.mrb[0].mxu0
        %v587 = vadd.f32 %v478, %v586
        %v588 = vpop.f32.mrb[0].mxu0
        %589 = vmatprep.mubr.f32.mxu0 0.0
        %590 = vmatmul.mubr.f32.gmra.mrb[0].mxu0 %v469
        %v591 = vpop.f32.mrb[0].mxu0
        %v592 = vadd.f32 %v478, %v591
        %v593 = vpop.f32.mrb[0].mxu0
        %594 = vmatprep.mubr.f32.mxu0 0.0
        %595 = vmatmul.mubr.f32.gmra.mrb[0].mxu0 %v470
        %v596 = vpop.f32.mrb[0].mxu0
        %v597 = vadd.f32 %v478, %v596
        %v598 = vpop.f32.mrb[0].mxu0
        %599 = vmatprep.mubr.f32.mxu0 0.0
        %600 = vmatmul.mubr.f32.gmra.mrb[0].mxu0 %v471
        %v601 = vpop.f32.mrb[0].mxu0
        %v602 = vadd.f32 %v478, %v601
        %v603 = vpop.f32.mrb[0].mxu0
        %604 = vmatprep.mubr.f32.mxu0 0.0
        %605 = vmatmul.mubr.f32.gmra.mrb[0].mxu0 %v472
        %v606 = vpop.f32.mrb[0].mxu0
        %v607 = vadd.f32 %v478, %v606
        %v608 = vpop.f32.mrb[0].mxu0
        %609 = vdwg.mxu0
        %610 = vst [vmem:[%s230] sm:$0xff] %v547
        %611 = vst [vmem:[%s230 + $0x8] sm:$0xff] %v552
        %612 = vst [vmem:[%s230 + $0x10] sm:$0xff] %v557
        %613 = vst [vmem:[%s230 + $0x18] sm:$0xff] %v562
        %614 = vst [vmem:[%s230 + $0x20] sm:$0xff] %v567
        %615 = vst [vmem:[%s230 + $0x28] sm:$0xff] %v572
        %616 = vst [vmem:[%s230 + $0x30] sm:$0xff] %v577
        %617 = vst [vmem:[%s230 + $0x38] sm:$0xff] %v582
        %618 = vst [vmem:[%s230 + $0x40] sm:$0xff] %v587
        %619 = vst [vmem:[%s230 + $0x48] sm:$0xff] %v592
        %620 = vst [vmem:[%s230 + $0x50] sm:$0xff] %v597
        %621 = vst [vmem:[%s230 + $0x58] sm:$0xff] %v602
        %622 = vst [vmem:[%s230 + $0x60] sm:$0xff] %v607
        %s623 = sand.u32 %s137, 1
        %s624 = scalar_lea.sflag [#allocation3], %s623
        %s625 = sand.u32 %s137, 1
        %s626 = smul.addr %s625, 104
        %s627 = scalar_lea.vmem [#allocation2], %s626
        // Predicated region
        $region41: #{tpu_custom_call.1} parent=39 // pred_check
          %p628 = pneg %p147
        $region42: #{tpu_custom_call.1} parent=39 // pred_check_branch
          %630 = sbr.rel (%p628) target = $region44
        $region43: #{tpu_custom_call.1} parent=39 // pred_region
          %s631 = smul.u32 13, %s19
          %s632 = ssub.s32 25, %s631
          %p633 = scmp.lt.s32.totalorder %s632, 13
          %s634 = scalar_select %p633, %s632, 13
          %s635 = smul.u32 128, %s634
          %s637 = ssub.s32 1664, %s635
          %638 = vsyncadd %s624, %s637
          %p639 = scmp.ne.s32.totalorder 0, %s635
          %s640 = smul.addr %s631, 128
          %s641 = scalar_lea.hbm %s5, %s640
          %s642 = smul.u32 8, %s634
          %s643 = sshll.u32 %s627, 4
          %s644 = int_to_ptr.vmem [resolvable:$true] %s643
          %s645 = sshll.u32 %s642, 4
          %649 = dma.vmem_to_hbm [thread:$0]  (%p639), %s644, %s645, %s641, %s624, 128, 128, 8
        $region44: #{tpu_custom_call.1} parent=39 // pred_fallthru
          _
      $region40: #{tpu_custom_call.1} parent=5 // pred_fallthru
        _
      %p650 = scmp.le.s32.totalorder 2, %s14
      // Predicated region
      $region45: #{tpu_custom_call.1} parent=5 // pred_check
        %p651 = pneg %p650
      $region46: #{tpu_custom_call.1} parent=5 // pred_check_branch
        %653 = sbr.rel (%p651) target = $region48
      $region47: #{tpu_custom_call.1} parent=5 // pred_region
        %s654 = ssub.s32 %s14, 2
        // Predicated region
        $region49: #{tpu_custom_call.1} parent=47 // pred_check
          %p655 = pneg %p153
        $region50: #{tpu_custom_call.1} parent=47 // pred_check_branch
          %657 = sbr.rel (%p655) target = $region52
        $region51: #{tpu_custom_call.1} parent=47 // pred_region
          %s658 = sand.u32 %s138, 1
          %s659 = scalar_lea.sflag [#allocation3], %s658
          %s660 = sand.u32 %s138, 1
          %s661 = smul.addr %s660, 104
          %s662 = scalar_lea.vmem [#allocation2], %s661
          %663 = dma.done %s659, 1664
        $region52: #{tpu_custom_call.1} parent=47 // pred_fallthru
          _
      $region48: #{tpu_custom_call.1} parent=5 // pred_fallthru
        _
    $region6: #{tpu_custom_call.1} parent=1 // loop_footer
      %s18 = sadd.s32 1, %s14
    $region7: #{tpu_custom_call.1} parent=1 // loop_footer_branch
      %13 = sbr.rel target = $region3
    $region8: #{tpu_custom_call.1} parent=1 // loop_exit
      _
    %664 = vsyncpa [#allocation3], 1
    %s665 = scalar_lea.sflag [#allocation3], 1
    %666 = vsyncpa %s665, 1

</llo_original>
